<compile_context>
chip_gen: v5e
topology: v5e:2x2
jax: 0.10.0
libtpu: 0.0.40
codegen_flags: <defaults>
</compile_context>

<pallas_src>
import math
import functools

import jax
import jax.numpy as jnp
from jax.experimental import pallas as pl
from jax.experimental.pallas import tpu as pltpu


def _round_up(x, m):
    return (x + m - 1) // m * m


def _cdiv(a, b):
    return -(-a // b)


# -----------------------------------------------------------------------------
# Pallas kernel: fused block-diagonal complex 2-layer MLP + ReLU + softshrink
# on a lane-dense token tile (tokens on lanes, channels on sublanes).
#   x_ref  : (Caug, Mt)  rows = [real chans | imag chans | ones | zero pad]
#   w1_ref : (Haug, Caug) augmented layer-1 weights (bias column folded in,
#            plus a row that carries the ones row through the ReLU)
#   w2_ref : (2C, Haug)   augmented layer-2 weights (bias column folded in)
#   o_ref  : (2C, Mt)     softshrink(layer2); real rows on top, imag below
# -----------------------------------------------------------------------------
def _afno_mlp_kernel(x_ref, w1_ref, w2_ref, o_ref, *, lam, bf16_dots):
    x = x_ref[...]
    w1 = w1_ref[...]
    w2 = w2_ref[...]
    if bf16_dots:
        x = x.astype(jnp.bfloat16)
        w1 = w1.astype(jnp.bfloat16)
        w2 = w2.astype(jnp.bfloat16)

    # layer 1 (complex packed) + ReLU  -> (Haug, Mt)
    o1 = jnp.maximum(jnp.dot(w1, x, preferred_element_type=jnp.float32), 0.0)
    if bf16_dots:
        o1 = o1.astype(jnp.bfloat16)

    # layer 2 (complex packed)         -> (2C, Mt)
    o2 = jnp.dot(w2, o1, preferred_element_type=jnp.float32)

    # softshrink(v) = v - clip(v, -lam, lam)
    o_ref[...] = o2 - jnp.clip(o2, -lam, lam)


# -----------------------------------------------------------------------------
# Tiling / weight-construction helpers
# -----------------------------------------------------------------------------
def _dual_tensorcore_chip():
    """True on chips with two TensorCores sharing HBM (v4 / v5p / v7x)."""
    try:
        kind = jax.devices()[0].device_kind.lower()
    except Exception:
        return False
    if "lite" in kind or "v5e" in kind or "v6" in kind:
        return False
    return any(tag in kind for tag in ("v4", "v5p", "v7", "7x"))


def _choose_m_tile(m):
    """Lane-dense M tile (multiple of 128)."""
    if _dual_tensorcore_chip():
        # >= 2 balanced tiles so both TensorCores get one pipeline step each.
        return min(_round_up(_cdiv(m, 2), 128), 1024)
    # Single TensorCore: one step at small M, 1024-lane tiles at large M.
    if m <= 1024:
        return _round_up(m, 128)
    return 1024


def _block_diag_T(w):
    """(nb, din, dout) per-block weights -> transposed block-diagonal
    (nb*dout, nb*din) dense matrix, so o^T = W_bd^T @ x^T.

    NOTE: O(C^2) flops/memory — the right call for small C (this demo).
    TODO(synk): for large C (e.g. C=768, nb=8 the dense matrix is 87.5%
    zeros) switch to a per-block batched formulation instead.
    """
    nb, din, dout = w.shape
    eye = jnp.eye(nb, dtype=w.dtype)
    # out[n*dout + o, m*din + i] = w[n, i, o] * delta(n, m)
    return jnp.einsum("nio,nm->nomi", w, eye).reshape(nb * dout, nb * din)


def _afno_mlp(x_aug, w1, b1, w2, b2, *, C, lam, bf16_dots=False):
    """x_aug: (Caug, M) f32, tokens on lanes.  Returns (2C, M) f32."""
    caug, M = x_aug.shape
    nb, bsf = w1.shape[1], w1.shape[3]
    Ch = nb * bsf
    haug = _round_up(2 * Ch + 1, 8)

    # --- complex-packed, bias-augmented weights (tiny; in a real model these
    # would be precomputed once outside the step function). -------------------
    w1rT, w1iT = _block_diag_T(w1[0]), _block_diag_T(w1[1])      # (Ch, C)
    w2rT, w2iT = _block_diag_T(w2[0]), _block_diag_T(w2[1])      # (C, Ch)
    W1c = jnp.concatenate(
        [jnp.concatenate([w1rT, -w1iT], axis=1),
         jnp.concatenate([w1iT,  w1rT], axis=1)], axis=0)        # (2Ch, 2C)
    W2c = jnp.concatenate(
        [jnp.concatenate([w2rT, -w2iT], axis=1),
         jnp.concatenate([w2iT,  w2rT], axis=1)], axis=0)        # (2C, 2Ch)
    b1c = jnp.concatenate([b1[0].reshape(-1), b1[1].reshape(-1)])  # (2Ch,)
    b2c = jnp.concatenate([b2[0].reshape(-1), b2[1].reshape(-1)])  # (2C,)

    W1a = jnp.zeros((haug, caug), jnp.float32)
    W1a = W1a.at[:2 * Ch, :2 * C].set(W1c)
    W1a = W1a.at[:2 * Ch, 2 * C].set(b1c)        # bias rides the ones row
    W1a = W1a.at[2 * Ch, 2 * C].set(1.0)         # ReLU(1) = 1 keeps it alive
    W2a = jnp.zeros((2 * C, haug), jnp.float32)
    W2a = W2a.at[:, :2 * Ch].set(W2c)
    W2a = W2a.at[:, 2 * Ch].set(b2c)

    # --- tiling ---------------------------------------------------------------
    Mt = _choose_m_tile(M)
    Mpad = _cdiv(M, Mt) * Mt
    if Mpad != M:
        x_aug = jnp.pad(x_aug, ((0, 0), (0, Mpad - M)))
    grid = (Mpad // Mt,)

    x_spec = pl.BlockSpec((caug, Mt), lambda m: (0, m))
    o_spec = pl.BlockSpec((2 * C, Mt), lambda m: (0, m))
    # Constant index maps -> weights are DMA'd once, not once per grid step.
    w1_spec = pl.BlockSpec(W1a.shape, lambda m: (0, 0))
    w2_spec = pl.BlockSpec(W2a.shape, lambda m: (0, 0))

    flops = 2 * Mpad * (haug * caug + 2 * C * haug)
    bytes_accessed = 4 * (caug * Mpad + 2 * C * Mpad
                          + haug * caug + 2 * C * haug)

    out = pl.pallas_call(
        functools.partial(_afno_mlp_kernel, lam=lam, bf16_dots=bf16_dots),
        out_shape=jax.ShapeDtypeStruct((2 * C, Mpad), jnp.float32),
        grid_spec=pltpu.PrefetchScalarGridSpec(
            num_scalar_prefetch=0,
            grid=grid,
            in_specs=[x_spec, w1_spec, w2_spec],
            out_specs=o_spec),
        compiler_params=pltpu.CompilerParams(
            dimension_semantics=("parallel",),
            vmem_limit_bytes=32 * 1024 * 1024),
        cost_estimate=pl.CostEstimate(
            flops=int(flops), transcendentals=0,
            bytes_accessed=int(bytes_accessed)),
    )(x_aug, W1a, W2a)
    return out[:, :M]


# -----------------------------------------------------------------------------
# Full AFNO2D forward (FFT + glue in JAX, fused MLP in Pallas)
# -----------------------------------------------------------------------------
def afno2d_forward(x, params, *, num_blocks, sparsity_threshold,
                   hard_thresholding_fraction, hidden_size_factor,
                   spatial_size=None, bf16_dots=False):
    del num_blocks, hidden_size_factor  # implied by param shapes
    w1, b1, w2, b2 = params["w1"], params["b1"], params["w2"], params["b2"]

    bias = x
    dtype = x.dtype
    x = x.astype(jnp.float32)
    B, N, C = x.shape
    if spatial_size is None:
        H = W = int(round(math.sqrt(N)))
        assert H * W == N, "non-square token grid: pass spatial_size=(H, W)"
    else:
        H, W = spatial_size

    xs = x.reshape(B, H, W, C)
    # TODO(synk): rfft2/irfft2 have no Pallas primitive; done in plain JAX/XLA.
    xf = jnp.fft.rfft2(xs, axes=(1, 2), norm="ortho")       # (B, H, Wf, C) c64
    Wf = xf.shape[2]

    total_modes = N // 2 + 1
    # Matches the PyTorch module: only the rfft W axis is truncated, and
    # slicing [:kept] with kept > Wf keeps everything.
    kept = min(int(total_modes * hard_thresholding_fraction), Wf)
    xk = xf[:, :, :kept, :]                                  # (B, H, kept, C)
    M = B * H * kept

    # Single transposed view: channels -> sublanes, tokens -> lanes; append
    # the ones row that carries the biases through the fused matmuls.
    xcf = jnp.moveaxis(xk, -1, 0).reshape(C, M)              # (C, M) complex
    caug = _round_up(2 * C + 1, 8)
    parts = [jnp.real(xcf), jnp.imag(xcf), jnp.ones((1, M), jnp.float32)]
    if caug > 2 * C + 1:
        parts.append(jnp.zeros((caug - 2 * C - 1, M), jnp.float32))
    x_aug = jnp.concatenate(parts, axis=0)                   # (caug, M)

    o = _afno_mlp(x_aug, w1, b1, w2, b2,
                  C=C, lam=sparsity_threshold, bf16_dots=bf16_dots)  # (2C, M)

    oc = jax.lax.complex(o[:C], o[C:]).reshape(C, B, H, kept)
    oc = jnp.moveaxis(oc, 0, -1)                             # (B, H, kept, C)
    if kept < Wf:
        oc = jnp.pad(oc, ((0, 0), (0, 0), (0, Wf - kept), (0, 0)))
    out = jnp.fft.irfft2(oc, s=(H, W), axes=(1, 2), norm="ortho")
    out = out.reshape(B, N, C).astype(dtype)
    return out + bias


# -----------------------------------------------------------------------------
# Pure-JAX reference (mirrors the PyTorch forward), used for a silent check.
# -----------------------------------------------------------------------------
def afno2d_reference(x, params, *, num_blocks, sparsity_threshold,
                     hard_thresholding_fraction, hidden_size_factor):
    w1, b1, w2, b2 = params["w1"], params["b1"], params["w2"], params["b2"]
    bias = x
    dtype = x.dtype
    x = x.astype(jnp.float32)
    B, N, C = x.shape
    H = W = int(round(math.sqrt(N)))
    nb = num_blocks
    bs = C // nb

    xs = x.reshape(B, H, W, C)
    xf = jnp.fft.rfft2(xs, axes=(1, 2), norm="ortho")
    Wf = xf.shape[2]
    xf = xf.reshape(B, H, Wf, nb, bs)

    total_modes = N // 2 + 1
    kept = min(int(total_modes * hard_thresholding_fraction), Wf)

    xkr = jnp.real(xf[:, :, :kept])
    xki = jnp.imag(xf[:, :, :kept])
    ein = lambda a, w: jnp.einsum("...bi,bio->...bo", a, w)
    o1r = jax.nn.relu(ein(xkr, w1[0]) - ein(xki, w1[1]) + b1[0])
    o1i = jax.nn.relu(ein(xki, w1[0]) + ein(xkr, w1[1]) + b1[1])
    o2r_k = ein(o1r, w2[0]) - ein(o1i, w2[1]) + b2[0]
    o2i_k = ein(o1i, w2[0]) + ein(o1r, w2[1]) + b2[1]

    o2r = jnp.zeros((B, H, Wf, nb, bs), jnp.float32).at[:, :, :kept].set(o2r_k)
    o2i = jnp.zeros((B, H, Wf, nb, bs), jnp.float32).at[:, :, :kept].set(o2i_k)

    lam = sparsity_threshold
    ss = lambda v: jnp.where(v > lam, v - lam, jnp.where(v < -lam, v + lam, 0.0))
    xc = (ss(o2r) + 1j * ss(o2i)).reshape(B, H, Wf, C).astype(jnp.complex64)
    out = jnp.fft.irfft2(xc, s=(H, W), axes=(1, 2), norm="ortho")
    return out.reshape(B, N, C).astype(dtype) + bias


# -----------------------------------------------------------------------------
if __name__ == "__main__":
    # Small config consistent with the module:
    #   hidden_size C = 32, num_blocks = 8, H = W = 16 -> N = 256, B = 2
    hidden_size = 32
    num_blocks = 8
    sparsity_threshold = 0.01
    hard_thresholding_fraction = 1.0
    hidden_size_factor = 1
    scale = 0.02

    block_size = hidden_size // num_blocks
    bsf = block_size * hidden_size_factor

    B, H, W = 2, 16, 16
    N = H * W

    key = jax.random.PRNGKey(0)
    kx, k1, k2, k3, k4 = jax.random.split(key, 5)

    x = jax.random.normal(kx, (B, N, hidden_size), dtype=jnp.float32)
    params = {
        "w1": scale * jax.random.normal(k1, (2, num_blocks, block_size, bsf), jnp.float32),
        "b1": scale * jax.random.normal(k2, (2, num_blocks, bsf), jnp.float32),
        "w2": scale * jax.random.normal(k3, (2, num_blocks, bsf, block_size), jnp.float32),
        "b2": scale * jax.random.normal(k4, (2, num_blocks, block_size), jnp.float32),
    }

    fwd = jax.jit(functools.partial(
        afno2d_forward,
        num_blocks=num_blocks,
        sparsity_threshold=sparsity_threshold,
        hard_thresholding_fraction=hard_thresholding_fraction,
        hidden_size_factor=hidden_size_factor,
        bf16_dots=False,   # flip to True on v5e/v6e/v7x for full-rate MXU
    ))

    out = fwd(x, params)
    out = jax.block_until_ready(out)

    # silent correctness check against the pure-JAX reference
    ref = afno2d_reference(
        x, params,
        num_blocks=num_blocks,
        sparsity_threshold=sparsity_threshold,
        hard_thresholding_fraction=hard_thresholding_fraction,
        hidden_size_factor=hidden_size_factor,
    )
    assert out.shape == (B, N, hidden_size)
    assert jnp.allclose(out, ref, atol=1e-4, rtol=1e-4)

    print("KERNEL_OK")
</pallas_src>

<mosaic_0001>
module attributes {stable_mosaic.version = 11 : i64} {
  func.func @_afno_mlp_kernel(%arg0: i32, %arg1: memref<72x384xf32, #tpu.memory_space<vmem>>, %arg2: memref<72x72xf32, #tpu.memory_space<vmem>>, %arg3: memref<64x72xf32, #tpu.memory_space<vmem>>, %arg4: memref<64x384xf32, #tpu.memory_space<vmem>>) attributes {dimension_semantics = [#tpu.dimension_semantics<parallel>], iteration_bounds = array<i64: 1>, scalar_prefetch = 0 : i64, scratch_operands = 0 : i64, tpu.core_type = #tpu.core_type<tc>, window_params = [{transform_indices = @transform_0, window_bounds = array<i64: 72, 384>}, {pipeline_mode = #tpu.pipeline_mode<synchronous>, transform_indices = @transform_1, window_bounds = array<i64: 72, 72>}, {pipeline_mode = #tpu.pipeline_mode<synchronous>, transform_indices = @transform_2, window_bounds = array<i64: 64, 72>}, {transform_indices = @transform_3, window_bounds = array<i64: 64, 384>}]} {
    %c0 = arith.constant 0 : index
    %c0_0 = arith.constant 0 : index
    %0 = vector.load %arg1[%c0, %c0_0] : memref<72x384xf32, #tpu.memory_space<vmem>>, vector<72x384xf32>
    %c0_1 = arith.constant 0 : index
    %c0_2 = arith.constant 0 : index
    %1 = vector.load %arg2[%c0_1, %c0_2] : memref<72x72xf32, #tpu.memory_space<vmem>>, vector<72x72xf32>
    %c0_3 = arith.constant 0 : index
    %c0_4 = arith.constant 0 : index
    %2 = vector.load %arg3[%c0_3, %c0_4] : memref<64x72xf32, #tpu.memory_space<vmem>>, vector<64x72xf32>
    %cst = arith.constant dense<0.000000e+00> : vector<72x384xf32>
    %3 = tpu.matmul %1, %0, %cst {dimension_numbers = #tpu.dot_dimension_numbers<[1], [0], [0], [1], [0, 0, 1, 1], [], []>} : vector<72x72xf32>, vector<72x384xf32>, vector<72x384xf32> -> vector<72x384xf32>
    %cst_5 = arith.constant 0.000000e+00 : f32
    %4 = vector.broadcast %cst_5 : f32 to vector<72x384xf32>
    %5 = arith.maximumf %3, %4 : vector<72x384xf32>
    %cst_6 = arith.constant dense<0.000000e+00> : vector<64x384xf32>
    %6 = tpu.matmul %2, %5, %cst_6 {dimension_numbers = #tpu.dot_dimension_numbers<[1], [0], [0], [1], [0, 0, 1, 1], [], []>} : vector<64x72xf32>, vector<72x384xf32>, vector<64x384xf32> -> vector<64x384xf32>
    %cst_7 = arith.constant -0.00999999977 : f32
    %cst_8 = arith.constant 0.00999999977 : f32
    %7 = vector.broadcast %cst_7 : f32 to vector<64x384xf32>
    %8 = arith.maximumf %7, %6 : vector<64x384xf32>
    %9 = vector.broadcast %cst_8 : f32 to vector<64x384xf32>
    %10 = arith.minimumf %9, %8 : vector<64x384xf32>
    %11 = arith.subf %6, %10 : vector<64x384xf32>
    %c0_9 = arith.constant 0 : index
    %c0_10 = arith.constant 0 : index
    %12 = vector.load %arg4[%c0_9, %c0_10] : memref<64x384xf32, #tpu.memory_space<vmem>>, vector<64x384xf32>
    tpu.vector_store %arg4[%c0_9, %c0_10], %11 {strides = array<i32>} : memref<64x384xf32, #tpu.memory_space<vmem>>, vector<64x384xf32>,
    return
  }
  func.func @transform_0(%arg0: i32) -> (i32, i32) {
    %c0_i32 = arith.constant 0 : i32
    %c0_i32_0 = arith.constant 0 : i32
    return %c0_i32, %arg0 : i32, i32
  }
  func.func @transform_1(%arg0: i32) -> (i32, i32) {
    %c0_i32 = arith.constant 0 : i32
    %c0_i32_0 = arith.constant 0 : i32
    %c0_i32_1 = arith.constant 0 : i32
    return %c0_i32, %c0_i32_0 : i32, i32
  }
  func.func @transform_2(%arg0: i32) -> (i32, i32) {
    %c0_i32 = arith.constant 0 : i32
    %c0_i32_0 = arith.constant 0 : i32
    %c0_i32_1 = arith.constant 0 : i32
    return %c0_i32, %c0_i32_0 : i32, i32
  }
  func.func @transform_3(%arg0: i32) -> (i32, i32) {
    %c0_i32 = arith.constant 0 : i32
    %c0_i32_0 = arith.constant 0 : i32
    return %c0_i32, %arg0 : i32, i32
  }
}

</mosaic_0001>

<llo_original>
// kernel: neg.2
$region0: #{neg.2}
  #allocation0 [shape = 's32[1]{0}', space=sflag, size = 0x4, scoped, tag = 'scoped memory for neg.2']
  %s0 = inlined_call_operand.vmem [shape: f32[32,32], index: 0, kind: input, shape index: {}]
  %s1 = inlined_call_operand.vmem [shape: f32[32,32], index: 1, kind: output, shape index: {}]
  %v2 = vld [vmem:[%s0] sm:$0xff]
  %3 = xla_tuple %v2
  %4 = xla_tuple %3
  %v5 = vxor.u32 %v2, 2147483648
  %6 = xla_tuple %v5
  %7 = vst [vmem:[%s1] sm:$0xff] %v5
  %s8 = scalar_lea.vmem %s0, 8
  %v9 = vld [vmem:[%s8] sm:$0xff]
  %10 = xla_tuple %v9
  %11 = xla_tuple %10
  %v12 = vxor.u32 %v9, 2147483648
  %13 = xla_tuple %v12
  %s14 = scalar_lea.vmem %s1, 8
  %15 = vst [vmem:[%s14] sm:$0xff] %v12
  %s16 = scalar_lea.vmem %s0, 16
  %v17 = vld [vmem:[%s16] sm:$0xff]
  %18 = xla_tuple %v17
  %19 = xla_tuple %18
  %v20 = vxor.u32 %v17, 2147483648
  %21 = xla_tuple %v20
  %s22 = scalar_lea.vmem %s1, 16
  %23 = vst [vmem:[%s22] sm:$0xff] %v20
  %s24 = scalar_lea.vmem %s0, 24
  %v25 = vld [vmem:[%s24] sm:$0xff]
  %26 = xla_tuple %v25
  %27 = xla_tuple %26
  %v28 = vxor.u32 %v25, 2147483648
  %29 = xla_tuple %v28
  %s30 = scalar_lea.vmem %s1, 24
  %31 = vst [vmem:[%s30] sm:$0xff] %v28

// kernel: squeeze.13
$region0: #{squeeze.13}
  %s0 = inlined_call_operand.vmem [shape: f32[1,8,4], index: 0, kind: input, shape index: {}]
  %s1 = inlined_call_operand.vmem [shape: f32[32], index: 1, kind: output, shape index: {}]
  $region1: #{squeeze.13} parent=0
    #allocation0 [shape = 'u8[4096]{0}', space=vmem, size = 0x1000, scoped, tag = 'scoped mem for output reshape']
    %v2 = vld [vmem:[%s0] sm:$0x1]
    %vm3 = vcmask 31744
    %4 = vst.msk [vmem:[#allocation0] sm:$0x1] %vm3, %v2
    %s5 = scalar_lea.vmem %s0, 7
    %v6 = vld [vmem:[%s5] sm:$0x1]
    %7 = vrot.lane.b32.xlu0 %v6, 28
    %v8 = vpop.permute.xlu0 %7
    %vm9 = vcmask 261344
    %10 = vst.msk [vmem:[#allocation0] sm:$0x1] %vm9, %v8
    %s11 = scalar_lea.vmem %s0, 6
    %v12 = vld [vmem:[%s11] sm:$0x1]
    %13 = vrot.lane.b32.xlu0 %v12, 24
    %v14 = vpop.permute.xlu0 %13
    %vm15 = vcmask 228544
    %16 = vst.msk [vmem:[#allocation0] sm:$0x1] %vm15, %v14
    %s17 = scalar_lea.vmem %s0, 5
    %v18 = vld [vmem:[%s17] sm:$0x1]
    %19 = vrot.lane.b32.xlu0 %v18, 20
    %v20 = vpop.permute.xlu0 %19
    %vm21 = vcmask 195744
    %22 = vst.msk [vmem:[#allocation0] sm:$0x1] %vm21, %v20
    %s23 = scalar_lea.vmem %s0, 4
    %v24 = vld [vmem:[%s23] sm:$0x1]
    %25 = vrot.lane.b32.xlu0 %v24, 16
    %v26 = vpop.permute.xlu0 %25
    %vm27 = vcmask 162944
    %28 = vst.msk [vmem:[#allocation0] sm:$0x1] %vm27, %v26
    %s29 = scalar_lea.vmem %s0, 3
    %v30 = vld [vmem:[%s29] sm:$0x1]
    %31 = vrot.lane.b32.xlu0 %v30, 12
    %v32 = vpop.permute.xlu0 %31
    %vm33 = vcmask 130144
    %34 = vst.msk [vmem:[#allocation0] sm:$0x1] %vm33, %v32
    %s35 = scalar_lea.vmem %s0, 2
    %v36 = vld [vmem:[%s35] sm:$0x1]
    %37 = vrot.lane.b32.xlu0 %v36, 8
    %v38 = vpop.permute.xlu0 %37
    %vm39 = vcmask 97344
    %40 = vst.msk [vmem:[#allocation0] sm:$0x1] %vm39, %v38
    %s41 = scalar_lea.vmem %s0, 1
    %v42 = vld [vmem:[%s41] sm:$0x1]
    %43 = vrot.lane.b32.xlu0 %v42, 4
    %v44 = vpop.permute.xlu0 %43
    %vm45 = vcmask 64544
    %46 = vst.msk [vmem:[#allocation0] sm:$0x1] %vm45, %v44
    %s48 = ssub.s32 2, 1
    %v49 = vld [vmem:[#allocation0] sm:%s48]
    %s51 = ssub.s32 2, 1
    %52 = vst [vmem:[%s1] sm:%s51] %v49

// kernel: reverse.1
$region0: #{reverse.1}
  #allocation0 [shape = 's32[1]{0}', space=sflag, size = 0x4, scoped, tag = 'scoped memory for reverse.1']
  %s0 = inlined_call_operand.vmem [shape: f32[2,32,16,7], index: 0, kind: input, shape index: {}]
  %s1 = inlined_call_operand.vmem [shape: f32[2,32,16,7], index: 1, kind: output, shape index: {}]
  %s2 = scalar_lea.vmem %s0, 96
  %v3 = vld [vmem:[%s2] sm:$0xff]
  %4 = vst [vmem:[%s1] sm:$0xff] %v3
  %s5 = scalar_lea.vmem %s0, 208
  %v6 = vld [vmem:[%s5] sm:$0xff]
  %s7 = scalar_lea.vmem %s1, 112
  %8 = vst [vmem:[%s7] sm:$0xff] %v6
  %s9 = scalar_lea.vmem %s0, 80
  %v10 = vld [vmem:[%s9] sm:$0xff]
  %s11 = scalar_lea.vmem %s1, 16
  %12 = vst [vmem:[%s11] sm:$0xff] %v10
  %s13 = scalar_lea.vmem %s0, 192
  %v14 = vld [vmem:[%s13] sm:$0xff]
  %s15 = scalar_lea.vmem %s1, 128
  %16 = vst [vmem:[%s15] sm:$0xff] %v14
  %s17 = scalar_lea.vmem %s0, 64
  %v18 = vld [vmem:[%s17] sm:$0xff]
  %s19 = scalar_lea.vmem %s1, 32
  %20 = vst [vmem:[%s19] sm:$0xff] %v18
  %s21 = scalar_lea.vmem %s0, 176
  %v22 = vld [vmem:[%s21] sm:$0xff]
  %s23 = scalar_lea.vmem %s1, 144
  %24 = vst [vmem:[%s23] sm:$0xff] %v22
  %s25 = scalar_lea.vmem %s0, 48
  %v26 = vld [vmem:[%s25] sm:$0xff]
  %s27 = scalar_lea.vmem %s1, 48
  %28 = vst [vmem:[%s27] sm:$0xff] %v26
  %s29 = scalar_lea.vmem %s0, 160
  %v30 = vld [vmem:[%s29] sm:$0xff]
  %s31 = scalar_lea.vmem %s1, 160
  %32 = vst [vmem:[%s31] sm:$0xff] %v30
  %s33 = scalar_lea.vmem %s0, 32
  %v34 = vld [vmem:[%s33] sm:$0xff]
  %s35 = scalar_lea.vmem %s1, 64
  %36 = vst [vmem:[%s35] sm:$0xff] %v34
  %s37 = scalar_lea.vmem %s0, 144
  %v38 = vld [vmem:[%s37] sm:$0xff]
  %s39 = scalar_lea.vmem %s1, 176
  %40 = vst [vmem:[%s39] sm:$0xff] %v38
  %s41 = scalar_lea.vmem %s0, 16
  %v42 = vld [vmem:[%s41] sm:$0xff]
  %s43 = scalar_lea.vmem %s1, 80
  %44 = vst [vmem:[%s43] sm:$0xff] %v42
  %s45 = scalar_lea.vmem %s0, 128
  %v46 = vld [vmem:[%s45] sm:$0xff]
  %s47 = scalar_lea.vmem %s1, 192
  %48 = vst [vmem:[%s47] sm:$0xff] %v46
  %v49 = vld [vmem:[%s0] sm:$0xff]
  %s50 = scalar_lea.vmem %s1, 96
  %51 = vst [vmem:[%s50] sm:$0xff] %v49
  %s52 = scalar_lea.vmem %s0, 112
  %v53 = vld [vmem:[%s52] sm:$0xff]
  %s54 = scalar_lea.vmem %s1, 208
  %55 = vst [vmem:[%s54] sm:$0xff] %v53
  %s56 = scalar_lea.vmem %s0, 104
  %v57 = vld [vmem:[%s56] sm:$0xff]
  %s58 = scalar_lea.vmem %s1, 8
  %59 = vst [vmem:[%s58] sm:$0xff] %v57
  %s60 = scalar_lea.vmem %s0, 216
  %v61 = vld [vmem:[%s60] sm:$0xff]
  %s62 = scalar_lea.vmem %s1, 120
  %63 = vst [vmem:[%s62] sm:$0xff] %v61
  %s64 = scalar_lea.vmem %s0, 88
  %v65 = vld [vmem:[%s64] sm:$0xff]
  %s66 = scalar_lea.vmem %s1, 24
  %67 = vst [vmem:[%s66] sm:$0xff] %v65
  %s68 = scalar_lea.vmem %s0, 200
  %v69 = vld [vmem:[%s68] sm:$0xff]
  %s70 = scalar_lea.vmem %s1, 136
  %71 = vst [vmem:[%s70] sm:$0xff] %v69
  %s72 = scalar_lea.vmem %s0, 72
  %v73 = vld [vmem:[%s72] sm:$0xff]
  %s74 = scalar_lea.vmem %s1, 40
  %75 = vst [vmem:[%s74] sm:$0xff] %v73
  %s76 = scalar_lea.vmem %s0, 184
  %v77 = vld [vmem:[%s76] sm:$0xff]
  %s78 = scalar_lea.vmem %s1, 152
  %79 = vst [vmem:[%s78] sm:$0xff] %v77
  %s80 = scalar_lea.vmem %s0, 56
  %v81 = vld [vmem:[%s80] sm:$0xff]
  %s82 = scalar_lea.vmem %s1, 56
  %83 = vst [vmem:[%s82] sm:$0xff] %v81
  %s84 = scalar_lea.vmem %s0, 168
  %v85 = vld [vmem:[%s84] sm:$0xff]
  %s86 = scalar_lea.vmem %s1, 168
  %87 = vst [vmem:[%s86] sm:$0xff] %v85
  %s88 = scalar_lea.vmem %s0, 40
  %v89 = vld [vmem:[%s88] sm:$0xff]
  %s90 = scalar_lea.vmem %s1, 72
  %91 = vst [vmem:[%s90] sm:$0xff] %v89
  %s92 = scalar_lea.vmem %s0, 152
  %v93 = vld [vmem:[%s92] sm:$0xff]
  %s94 = scalar_lea.vmem %s1, 184
  %95 = vst [vmem:[%s94] sm:$0xff] %v93
  %s96 = scalar_lea.vmem %s0, 24
  %v97 = vld [vmem:[%s96] sm:$0xff]
  %s98 = scalar_lea.vmem %s1, 88
  %99 = vst [vmem:[%s98] sm:$0xff] %v97
  %s100 = scalar_lea.vmem %s0, 136
  %v101 = vld [vmem:[%s100] sm:$0xff]
  %s102 = scalar_lea.vmem %s1, 200
  %103 = vst [vmem:[%s102] sm:$0xff] %v101
  %s104 = scalar_lea.vmem %s0, 8
  %v105 = vld [vmem:[%s104] sm:$0xff]
  %s106 = scalar_lea.vmem %s1, 104
  %107 = vst [vmem:[%s106] sm:$0xff] %v105
  %s108 = scalar_lea.vmem %s0, 120
  %v109 = vld [vmem:[%s108] sm:$0xff]
  %s110 = scalar_lea.vmem %s1, 216
  %111 = vst [vmem:[%s110] sm:$0xff] %v109

// kernel: afno2d_forward.1
$region0: #{afno2d_forward.1}
  #allocation0 [shape = 'u32[]', space=smem, size = 0x4, offset = 0x4, fixed_abs, tag = 'smem constant byte address 0x4 - core index']
  #allocation1 [shape = 'u32[72,128]{1,0:T(1,128)}', space=vmem, size = 0x9000, scoped, tag = 'internal scratch']
  %s0 = inlined_call_operand.vmem [shape: f32[72,384], index: 0, kind: input, shape index: {}]
  %s1 = inlined_call_operand.vmem [shape: f32[72,72], index: 1, kind: input, shape index: {}]
  %s2 = inlined_call_operand.vmem [shape: f32[64,72], index: 2, kind: input, shape index: {}]
  %s3 = inlined_call_operand.vmem [shape: f32[64,384], index: 3, kind: output, shape index: {}]
  %s4 = sld [smem:[#allocation0]]
  $region22: #{afno2d_forward.1} parent=0
    _
  %s6 = ssub.s32 1, %s4
  %s7 = scalar_select 0, %s6, %s4
  // Predicated region
  $region2: #{afno2d_forward.1} parent=0 // pred_check
    _
  $region3: #{afno2d_forward.1} parent=0 // pred_check_branch
    %9 = sbr.rel (0) target = $region5
  $region4: #{afno2d_forward.1} parent=0 // pred_region
    _
  $region5: #{afno2d_forward.1} parent=0 // pred_fallthru
    _
  // Predicated region
  $region6: #{afno2d_forward.1} parent=0 // pred_check
    _
  $region7: #{afno2d_forward.1} parent=0 // pred_check_branch
    %11 = sbr.rel (0) target = $region9
  $region8: #{afno2d_forward.1} parent=0 // pred_region
    _
  $region9: #{afno2d_forward.1} parent=0 // pred_fallthru
    _
  // Predicated region
  $region10: #{afno2d_forward.1} parent=0 // pred_check
    _
  $region11: #{afno2d_forward.1} parent=0 // pred_check_branch
    %13 = sbr.rel (0) target = $region13
  $region12: #{afno2d_forward.1} parent=0 // pred_region
    _
  $region13: #{afno2d_forward.1} parent=0 // pred_fallthru
    _
  %v14 = vld [vmem:[%s0] sm:$0xff]
  %v15 = vld [vmem:[%s0 + $0x8] sm:$0xff]
  %v16 = vld [vmem:[%s0 + $0x10] sm:$0xff]
  %v17 = vld [vmem:[%s0 + $0x18] sm:$0xff]
  %v18 = vld [vmem:[%s0 + $0x20] sm:$0xff]
  %v19 = vld [vmem:[%s0 + $0x28] sm:$0xff]
  %v20 = vld [vmem:[%s0 + $0x30] sm:$0xff]
  %v21 = vld [vmem:[%s0 + $0x38] sm:$0xff]
  %v22 = vld [vmem:[%s0 + $0x40] sm:$0xff]
  %v23 = vld [vmem:[%s0 + $0x48] sm:$0xff]
  %v24 = vld [vmem:[%s0 + $0x50] sm:$0xff]
  %v25 = vld [vmem:[%s0 + $0x58] sm:$0xff]
  %v26 = vld [vmem:[%s0 + $0x60] sm:$0xff]
  %v27 = vld [vmem:[%s0 + $0x68] sm:$0xff]
  %v28 = vld [vmem:[%s0 + $0x70] sm:$0xff]
  %v29 = vld [vmem:[%s0 + $0x78] sm:$0xff]
  %v30 = vld [vmem:[%s0 + $0x80] sm:$0xff]
  %v31 = vld [vmem:[%s0 + $0x88] sm:$0xff]
  %v32 = vld [vmem:[%s0 + $0x90] sm:$0xff]
  %v33 = vld [vmem:[%s0 + $0x98] sm:$0xff]
  %v34 = vld [vmem:[%s0 + $0xa0] sm:$0xff]
  %v35 = vld [vmem:[%s0 + $0xa8] sm:$0xff]
  %v36 = vld [vmem:[%s0 + $0xb0] sm:$0xff]
  %v37 = vld [vmem:[%s0 + $0xb8] sm:$0xff]
  %v38 = vld [vmem:[%s0 + $0xc0] sm:$0xff]
  %v39 = vld [vmem:[%s0 + $0xc8] sm:$0xff]
  %v40 = vld [vmem:[%s0 + $0xd0] sm:$0xff]
  %v41 = vld [vmem:[%s1] sm:$0xff]
  %v42 = vld [vmem:[%s1 + $0x8] sm:$0xff]
  %v43 = vld [vmem:[%s1 + $0x10] sm:$0xff]
  %v44 = vld [vmem:[%s1 + $0x18] sm:$0xff]
  %v45 = vld [vmem:[%s1 + $0x20] sm:$0xff]
  %v46 = vld [vmem:[%s1 + $0x28] sm:$0xff]
  %v47 = vld [vmem:[%s1 + $0x30] sm:$0xff]
  %v48 = vld [vmem:[%s1 + $0x38] sm:$0xff]
  %v49 = vld [vmem:[%s1 + $0x40] sm:$0xff]
  %v50 = vld [vmem:[%s2] sm:$0xff]
  %v51 = vld [vmem:[%s2 + $0x8] sm:$0xff]
  %v52 = vld [vmem:[%s2 + $0x10] sm:$0xff]
  %v53 = vld [vmem:[%s2 + $0x18] sm:$0xff]
  %v54 = vld [vmem:[%s2 + $0x20] sm:$0xff]
  %v55 = vld [vmem:[%s2 + $0x28] sm:$0xff]
  %v56 = vld [vmem:[%s2 + $0x30] sm:$0xff]
  %v57 = vld [vmem:[%s2 + $0x38] sm:$0xff]
  %vm58 = vcmask 588800
  %v60 = vsel %vm58, %v41, 0
  %v63 = vsel %vm58, %v42, 0
  %v66 = vsel %vm58, %v43, 0
  %v69 = vsel %vm58, %v44, 0
  %v72 = vsel %vm58, %v45, 0
  %v75 = vsel %vm58, %v46, 0
  %v78 = vsel %vm58, %v47, 0
  %v81 = vsel %vm58, %v48, 0
  %v84 = vsel %vm58, %v49, 0
  %86 = vmatpush.msra.mxu0 0.0
  %87 = vmatpush.msra.mxu0 0.0
  %88 = vmatpush.msra.mxu0 0.0
  %89 = vmatpush.msra.mxu0 0.0
  %90 = vmatpush.msra.mxu0 0.0
  %91 = vmatpush.msra.mxu0 0.0
  %92 = vmatpush.msra.mxu0 0.0
  %93 = vmatpush.msra.mxu0 %v38
  %94 = vmatpush.msra.mxu0 %v35
  %95 = vmatpush.msra.mxu0 %v32
  %96 = vmatpush.msra.mxu0 %v29
  %97 = vmatpush.msra.mxu0 %v26
  %98 = vmatpush.msra.mxu0 %v23
  %99 = vmatpush.msra.mxu0 %v20
  %100 = vmatpush.msra.mxu0 %v17
  %101 = vmatpush.msra.mxu0 %v14
  %102 = vmatmul.f32.gmra.mxu0 %v60
  %v103 = vpop.f32.mrf.mxu0
  %v104 = vadd.f32 0.0, %v103
  %105 = vmatmul.f32.gmra.mxu0 %v63
  %v106 = vpop.f32.mrf.mxu0
  %v107 = vadd.f32 0.0, %v106
  %108 = vmatmul.f32.gmra.mxu0 %v66
  %v109 = vpop.f32.mrf.mxu0
  %v110 = vadd.f32 0.0, %v109
  %111 = vmatmul.f32.gmra.mxu0 %v69
  %v112 = vpop.f32.mrf.mxu0
  %v113 = vadd.f32 0.0, %v112
  %114 = vmatmul.f32.gmra.mxu0 %v72
  %v115 = vpop.f32.mrf.mxu0
  %v116 = vadd.f32 0.0, %v115
  %117 = vmatmul.f32.gmra.mxu0 %v75
  %v118 = vpop.f32.mrf.mxu0
  %v119 = vadd.f32 0.0, %v118
  %120 = vmatmul.f32.gmra.mxu0 %v78
  %v121 = vpop.f32.mrf.mxu0
  %v122 = vadd.f32 0.0, %v121
  %123 = vmatmul.f32.gmra.mxu0 %v81
  %v124 = vpop.f32.mrf.mxu0
  %v125 = vadd.f32 0.0, %v124
  %126 = vmatmul.f32.gmra.mxu0 %v84
  %v127 = vpop.f32.mrf.mxu0
  %v128 = vadd.f32 0.0, %v127
  %129 = vdwg.mxu0
  %130 = vmatpush.msra.mxu0 0.0
  %131 = vmatpush.msra.mxu0 0.0
  %132 = vmatpush.msra.mxu0 0.0
  %133 = vmatpush.msra.mxu0 0.0
  %134 = vmatpush.msra.mxu0 0.0
  %135 = vmatpush.msra.mxu0 0.0
  %136 = vmatpush.msra.mxu0 0.0
  %137 = vmatpush.msra.mxu0 %v39
  %138 = vmatpush.msra.mxu0 %v36
  %139 = vmatpush.msra.mxu0 %v33
  %140 = vmatpush.msra.mxu0 %v30
  %141 = vmatpush.msra.mxu0 %v27
  %142 = vmatpush.msra.mxu0 %v24
  %143 = vmatpush.msra.mxu0 %v21
  %144 = vmatpush.msra.mxu0 %v18
  %145 = vmatpush.msra.mxu0 %v15
  %146 = vmatmul.f32.gmra.mxu0 %v60
  %v147 = vpop.f32.mrf.mxu0
  %v148 = vadd.f32 0.0, %v147
  %149 = vmatmul.f32.gmra.mxu0 %v63
  %v150 = vpop.f32.mrf.mxu0
  %v151 = vadd.f32 0.0, %v150
  %152 = vmatmul.f32.gmra.mxu0 %v66
  %v153 = vpop.f32.mrf.mxu0
  %v154 = vadd.f32 0.0, %v153
  %155 = vmatmul.f32.gmra.mxu0 %v69
  %v156 = vpop.f32.mrf.mxu0
  %v157 = vadd.f32 0.0, %v156
  %158 = vmatmul.f32.gmra.mxu0 %v72
  %v159 = vpop.f32.mrf.mxu0
  %v160 = vadd.f32 0.0, %v159
  %161 = vmatmul.f32.gmra.mxu0 %v75
  %v162 = vpop.f32.mrf.mxu0
  %v163 = vadd.f32 0.0, %v162
  %164 = vmatmul.f32.gmra.mxu0 %v78
  %v165 = vpop.f32.mrf.mxu0
  %v166 = vadd.f32 0.0, %v165
  %167 = vmatmul.f32.gmra.mxu0 %v81
  %v168 = vpop.f32.mrf.mxu0
  %v169 = vadd.f32 0.0, %v168
  %170 = vmatmul.f32.gmra.mxu0 %v84
  %v171 = vpop.f32.mrf.mxu0
  %v172 = vadd.f32 0.0, %v171
  %173 = vdwg.mxu0
  %174 = vmatpush.msra.mxu0 0.0
  %175 = vmatpush.msra.mxu0 0.0
  %176 = vmatpush.msra.mxu0 0.0
  %177 = vmatpush.msra.mxu0 0.0
  %178 = vmatpush.msra.mxu0 0.0
  %179 = vmatpush.msra.mxu0 0.0
  %180 = vmatpush.msra.mxu0 0.0
  %181 = vmatpush.msra.mxu0 %v40
  %182 = vmatpush.msra.mxu0 %v37
  %183 = vmatpush.msra.mxu0 %v34
  %184 = vmatpush.msra.mxu0 %v31
  %185 = vmatpush.msra.mxu0 %v28
  %186 = vmatpush.msra.mxu0 %v25
  %187 = vmatpush.msra.mxu0 %v22
  %188 = vmatpush.msra.mxu0 %v19
  %189 = vmatpush.msra.mxu0 %v16
  %190 = vmatmul.f32.gmra.mxu0 %v60
  %v191 = vpop.f32.mrf.mxu0
  %v192 = vadd.f32 0.0, %v191
  %193 = vmatmul.f32.gmra.mxu0 %v63
  %v194 = vpop.f32.mrf.mxu0
  %v195 = vadd.f32 0.0, %v194
  %196 = vmatmul.f32.gmra.mxu0 %v66
  %v197 = vpop.f32.mrf.mxu0
  %v198 = vadd.f32 0.0, %v197
  %199 = vmatmul.f32.gmra.mxu0 %v69
  %v200 = vpop.f32.mrf.mxu0
  %v201 = vadd.f32 0.0, %v200
  %202 = vmatmul.f32.gmra.mxu0 %v72
  %v203 = vpop.f32.mrf.mxu0
  %v204 = vadd.f32 0.0, %v203
  %205 = vmatmul.f32.gmra.mxu0 %v75
  %v206 = vpop.f32.mrf.mxu0
  %v207 = vadd.f32 0.0, %v206
  %208 = vmatmul.f32.gmra.mxu0 %v78
  %v209 = vpop.f32.mrf.mxu0
  %v210 = vadd.f32 0.0, %v209
  %211 = vmatmul.f32.gmra.mxu0 %v81
  %v212 = vpop.f32.mrf.mxu0
  %v213 = vadd.f32 0.0, %v212
  %214 = vmatmul.f32.gmra.mxu0 %v84
  %v215 = vpop.f32.mrf.mxu0
  %v216 = vadd.f32 0.0, %v215
  %217 = vdwg.mxu0
  %v218 = vmax.f32 %v104, 0.0
  %v219 = vmax.f32 %v148, 0.0
  %v220 = vmax.f32 %v192, 0.0
  %v221 = vmax.f32 %v107, 0.0
  %v222 = vmax.f32 %v151, 0.0
  %v223 = vmax.f32 %v195, 0.0
  %v224 = vmax.f32 %v110, 0.0
  %v225 = vmax.f32 %v154, 0.0
  %v226 = vmax.f32 %v198, 0.0
  %v227 = vmax.f32 %v113, 0.0
  %v228 = vmax.f32 %v157, 0.0
  %v229 = vmax.f32 %v201, 0.0
  %v230 = vmax.f32 %v116, 0.0
  %v231 = vmax.f32 %v160, 0.0
  %v232 = vmax.f32 %v204, 0.0
  %v233 = vmax.f32 %v119, 0.0
  %v234 = vmax.f32 %v163, 0.0
  %v235 = vmax.f32 %v207, 0.0
  %v236 = vmax.f32 %v122, 0.0
  %v237 = vmax.f32 %v166, 0.0
  %v238 = vmax.f32 %v210, 0.0
  %v239 = vmax.f32 %v125, 0.0
  %v240 = vmax.f32 %v169, 0.0
  %v241 = vmax.f32 %v213, 0.0
  %v242 = vmax.f32 %v128, 0.0
  %v243 = vmax.f32 %v172, 0.0
  %v244 = vmax.f32 %v216, 0.0
  %v246 = vsel %vm58, %v50, 0
  %v249 = vsel %vm58, %v51, 0
  %v252 = vsel %vm58, %v52, 0
  %v255 = vsel %vm58, %v53, 0
  %v258 = vsel %vm58, %v54, 0
  %v261 = vsel %vm58, %v55, 0
  %v264 = vsel %vm58, %v56, 0
  %v267 = vsel %vm58, %v57, 0
  %269 = vmatpush.msra.mxu0 0.0
  %270 = vmatpush.msra.mxu0 0.0
  %271 = vmatpush.msra.mxu0 0.0
  %272 = vmatpush.msra.mxu0 0.0
  %273 = vmatpush.msra.mxu0 0.0
  %274 = vmatpush.msra.mxu0 0.0
  %275 = vmatpush.msra.mxu0 0.0
  %276 = vmatpush.msra.mxu0 %v242
  %277 = vmatpush.msra.mxu0 %v239
  %278 = vmatpush.msra.mxu0 %v236
  %279 = vmatpush.msra.mxu0 %v233
  %280 = vmatpush.msra.mxu0 %v230
  %281 = vmatpush.msra.mxu0 %v227
  %282 = vmatpush.msra.mxu0 %v224
  %283 = vmatpush.msra.mxu0 %v221
  %284 = vmatpush.msra.mxu0 %v218
  %285 = vmatmul.f32.gmra.mxu0 %v246
  %v286 = vpop.f32.mrf.mxu0
  %v287 = vadd.f32 0.0, %v286
  %288 = vmatmul.f32.gmra.mxu0 %v249
  %v289 = vpop.f32.mrf.mxu0
  %v290 = vadd.f32 0.0, %v289
  %291 = vmatmul.f32.gmra.mxu0 %v252
  %v292 = vpop.f32.mrf.mxu0
  %v293 = vadd.f32 0.0, %v292
  %294 = vmatmul.f32.gmra.mxu0 %v255
  %v295 = vpop.f32.mrf.mxu0
  %v296 = vadd.f32 0.0, %v295
  %297 = vmatmul.f32.gmra.mxu0 %v258
  %v298 = vpop.f32.mrf.mxu0
  %v299 = vadd.f32 0.0, %v298
  %300 = vmatmul.f32.gmra.mxu0 %v261
  %v301 = vpop.f32.mrf.mxu0
  %v302 = vadd.f32 0.0, %v301
  %303 = vmatmul.f32.gmra.mxu0 %v264
  %v304 = vpop.f32.mrf.mxu0
  %v305 = vadd.f32 0.0, %v304
  %306 = vmatmul.f32.gmra.mxu0 %v267
  %v307 = vpop.f32.mrf.mxu0
  %v308 = vadd.f32 0.0, %v307
  %309 = vdwg.mxu0
  %310 = vmatpush.msra.mxu0 0.0
  %311 = vmatpush.msra.mxu0 0.0
  %312 = vmatpush.msra.mxu0 0.0
  %313 = vmatpush.msra.mxu0 0.0
  %314 = vmatpush.msra.mxu0 0.0
  %315 = vmatpush.msra.mxu0 0.0
  %316 = vmatpush.msra.mxu0 0.0
  %317 = vmatpush.msra.mxu0 %v243
  %318 = vmatpush.msra.mxu0 %v240
  %319 = vmatpush.msra.mxu0 %v237
  %320 = vmatpush.msra.mxu0 %v234
  %321 = vmatpush.msra.mxu0 %v231
  %322 = vmatpush.msra.mxu0 %v228
  %323 = vmatpush.msra.mxu0 %v225
  %324 = vmatpush.msra.mxu0 %v222
  %325 = vmatpush.msra.mxu0 %v219
  %326 = vmatmul.f32.gmra.mxu0 %v246
  %v327 = vpop.f32.mrf.mxu0
  %v328 = vadd.f32 0.0, %v327
  %329 = vmatmul.f32.gmra.mxu0 %v249
  %v330 = vpop.f32.mrf.mxu0
  %v331 = vadd.f32 0.0, %v330
  %332 = vmatmul.f32.gmra.mxu0 %v252
  %v333 = vpop.f32.mrf.mxu0
  %v334 = vadd.f32 0.0, %v333
  %335 = vmatmul.f32.gmra.mxu0 %v255
  %v336 = vpop.f32.mrf.mxu0
  %v337 = vadd.f32 0.0, %v336
  %338 = vmatmul.f32.gmra.mxu0 %v258
  %v339 = vpop.f32.mrf.mxu0
  %v340 = vadd.f32 0.0, %v339
  %341 = vmatmul.f32.gmra.mxu0 %v261
  %v342 = vpop.f32.mrf.mxu0
  %v343 = vadd.f32 0.0, %v342
  %344 = vmatmul.f32.gmra.mxu0 %v264
  %v345 = vpop.f32.mrf.mxu0
  %v346 = vadd.f32 0.0, %v345
  %347 = vmatmul.f32.gmra.mxu0 %v267
  %v348 = vpop.f32.mrf.mxu0
  %v349 = vadd.f32 0.0, %v348
  %350 = vdwg.mxu0
  %351 = vmatpush.msra.mxu0 0.0
  %352 = vmatpush.msra.mxu0 0.0
  %353 = vmatpush.msra.mxu0 0.0
  %354 = vmatpush.msra.mxu0 0.0
  %355 = vmatpush.msra.mxu0 0.0
  %356 = vmatpush.msra.mxu0 0.0
  %357 = vmatpush.msra.mxu0 0.0
  %358 = vmatpush.msra.mxu0 %v244
  %359 = vmatpush.msra.mxu0 %v241
  %360 = vmatpush.msra.mxu0 %v238
  %361 = vmatpush.msra.mxu0 %v235
  %362 = vmatpush.msra.mxu0 %v232
  %363 = vmatpush.msra.mxu0 %v229
  %364 = vmatpush.msra.mxu0 %v226
  %365 = vmatpush.msra.mxu0 %v223
  %366 = vmatpush.msra.mxu0 %v220
  %367 = vmatmul.f32.gmra.mxu0 %v246
  %v368 = vpop.f32.mrf.mxu0
  %v369 = vadd.f32 0.0, %v368
  %370 = vmatmul.f32.gmra.mxu0 %v249
  %v371 = vpop.f32.mrf.mxu0
  %v372 = vadd.f32 0.0, %v371
  %373 = vmatmul.f32.gmra.mxu0 %v252
  %v374 = vpop.f32.mrf.mxu0
  %v375 = vadd.f32 0.0, %v374
  %376 = vmatmul.f32.gmra.mxu0 %v255
  %v377 = vpop.f32.mrf.mxu0
  %v378 = vadd.f32 0.0, %v377
  %379 = vmatmul.f32.gmra.mxu0 %v258
  %v380 = vpop.f32.mrf.mxu0
  %v381 = vadd.f32 0.0, %v380
  %382 = vmatmul.f32.gmra.mxu0 %v261
  %v383 = vpop.f32.mrf.mxu0
  %v384 = vadd.f32 0.0, %v383
  %385 = vmatmul.f32.gmra.mxu0 %v264
  %v386 = vpop.f32.mrf.mxu0
  %v387 = vadd.f32 0.0, %v386
  %388 = vmatmul.f32.gmra.mxu0 %v267
  %v389 = vpop.f32.mrf.mxu0
  %v390 = vadd.f32 0.0, %v389
  %391 = vdwg.mxu0
  %v392 = vmax.f32 %v287, -0.01
  %v393 = vmax.f32 %v328, -0.01
  %v394 = vmax.f32 %v369, -0.01
  %v395 = vmax.f32 %v290, -0.01
  %v396 = vmax.f32 %v331, -0.01
  %v397 = vmax.f32 %v372, -0.01
  %v398 = vmax.f32 %v293, -0.01
  %v399 = vmax.f32 %v334, -0.01
  %v400 = vmax.f32 %v375, -0.01
  %v401 = vmax.f32 %v296, -0.01
  %v402 = vmax.f32 %v337, -0.01
  %v403 = vmax.f32 %v378, -0.01
  %v404 = vmax.f32 %v299, -0.01
  %v405 = vmax.f32 %v340, -0.01
  %v406 = vmax.f32 %v381, -0.01
  %v407 = vmax.f32 %v302, -0.01
  %v408 = vmax.f32 %v343, -0.01
  %v409 = vmax.f32 %v384, -0.01
  %v410 = vmax.f32 %v305, -0.01
  %v411 = vmax.f32 %v346, -0.01
  %v412 = vmax.f32 %v387, -0.01
  %v413 = vmax.f32 %v308, -0.01
  %v414 = vmax.f32 %v349, -0.01
  %v415 = vmax.f32 %v390, -0.01
  %v416 = vmin.f32 %v392, 0.01
  %v417 = vmin.f32 %v393, 0.01
  %v418 = vmin.f32 %v394, 0.01
  %v419 = vmin.f32 %v395, 0.01
  %v420 = vmin.f32 %v396, 0.01
  %v421 = vmin.f32 %v397, 0.01
  %v422 = vmin.f32 %v398, 0.01
  %v423 = vmin.f32 %v399, 0.01
  %v424 = vmin.f32 %v400, 0.01
  %v425 = vmin.f32 %v401, 0.01
  %v426 = vmin.f32 %v402, 0.01
  %v427 = vmin.f32 %v403, 0.01
  %v428 = vmin.f32 %v404, 0.01
  %v429 = vmin.f32 %v405, 0.01
  %v430 = vmin.f32 %v406, 0.01
  %v431 = vmin.f32 %v407, 0.01
  %v432 = vmin.f32 %v408, 0.01
  %v433 = vmin.f32 %v409, 0.01
  %v434 = vmin.f32 %v410, 0.01
  %v435 = vmin.f32 %v411, 0.01
  %v436 = vmin.f32 %v412, 0.01
  %v437 = vmin.f32 %v413, 0.01
  %v438 = vmin.f32 %v414, 0.01
  %v439 = vmin.f32 %v415, 0.01
  %v440 = vsub.f32 %v287, %v416
  %v441 = vsub.f32 %v328, %v417
  %v442 = vsub.f32 %v369, %v418
  %v443 = vsub.f32 %v290, %v419
  %v444 = vsub.f32 %v331, %v420
  %v445 = vsub.f32 %v372, %v421
  %v446 = vsub.f32 %v293, %v422
  %v447 = vsub.f32 %v334, %v423
  %v448 = vsub.f32 %v375, %v424
  %v449 = vsub.f32 %v296, %v425
  %v450 = vsub.f32 %v337, %v426
  %v451 = vsub.f32 %v378, %v427
  %v452 = vsub.f32 %v299, %v428
  %v453 = vsub.f32 %v340, %v429
  %v454 = vsub.f32 %v381, %v430
  %v455 = vsub.f32 %v302, %v431
  %v456 = vsub.f32 %v343, %v432
  %v457 = vsub.f32 %v384, %v433
  %v458 = vsub.f32 %v305, %v434
  %v459 = vsub.f32 %v346, %v435
  %v460 = vsub.f32 %v387, %v436
  %v461 = vsub.f32 %v308, %v437
  %v462 = vsub.f32 %v349, %v438
  %v463 = vsub.f32 %v390, %v439
  %464 = vst [vmem:[%s3] sm:$0xff] %v440
  %465 = vst [vmem:[%s3 + $0x8] sm:$0xff] %v441
  %466 = vst [vmem:[%s3 + $0x10] sm:$0xff] %v442
  %467 = vst [vmem:[%s3 + $0x18] sm:$0xff] %v443
  %468 = vst [vmem:[%s3 + $0x20] sm:$0xff] %v444
  %469 = vst [vmem:[%s3 + $0x28] sm:$0xff] %v445
  %470 = vst [vmem:[%s3 + $0x30] sm:$0xff] %v446
  %471 = vst [vmem:[%s3 + $0x38] sm:$0xff] %v447
  %472 = vst [vmem:[%s3 + $0x40] sm:$0xff] %v448
  %473 = vst [vmem:[%s3 + $0x48] sm:$0xff] %v449
  %474 = vst [vmem:[%s3 + $0x50] sm:$0xff] %v450
  %475 = vst [vmem:[%s3 + $0x58] sm:$0xff] %v451
  %476 = vst [vmem:[%s3 + $0x60] sm:$0xff] %v452
  %477 = vst [vmem:[%s3 + $0x68] sm:$0xff] %v453
  %478 = vst [vmem:[%s3 + $0x70] sm:$0xff] %v454
  %479 = vst [vmem:[%s3 + $0x78] sm:$0xff] %v455
  %480 = vst [vmem:[%s3 + $0x80] sm:$0xff] %v456
  %481 = vst [vmem:[%s3 + $0x88] sm:$0xff] %v457
  %482 = vst [vmem:[%s3 + $0x90] sm:$0xff] %v458
  %483 = vst [vmem:[%s3 + $0x98] sm:$0xff] %v459
  %484 = vst [vmem:[%s3 + $0xa0] sm:$0xff] %v460
  %485 = vst [vmem:[%s3 + $0xa8] sm:$0xff] %v461
  %486 = vst [vmem:[%s3 + $0xb0] sm:$0xff] %v462
  %487 = vst [vmem:[%s3 + $0xb8] sm:$0xff] %v463
  // Predicated region
  $region14: #{afno2d_forward.1} parent=0 // pred_check
    _
  $region15: #{afno2d_forward.1} parent=0 // pred_check_branch
    %489 = sbr.rel (0) target = $region17
  $region16: #{afno2d_forward.1} parent=0 // pred_region
    _
  $region17: #{afno2d_forward.1} parent=0 // pred_fallthru
    _
  // Predicated region
  $region18: #{afno2d_forward.1} parent=0 // pred_check
    _
  $region19: #{afno2d_forward.1} parent=0 // pred_check_branch
    %491 = sbr.rel (0) target = $region21
  $region20: #{afno2d_forward.1} parent=0 // pred_region
    _
  $region21: #{afno2d_forward.1} parent=0 // pred_fallthru
    _

</llo_original>
